<compile_context>
chip_gen: v6e
topology: v6e:2x2x1
jax: 0.10.0
libtpu: 0.0.40
codegen_flags: <defaults>
</compile_context>

<pallas_src>
import functools

import jax
import jax.numpy as jnp
from jax.experimental import pallas as pl
from jax.experimental.pallas import tpu as pltpu


def _head_kernel(x_ref, w_ref, b1_ref, s2p_ref, s2n_ref, b2_ref, o_ref):
    # x_ref: (tm, Cin), w_ref: (Cin, Rp)  [bn1 scale pre-folded into w]
    # params: (1, Rp),  o_ref: (tm, Rp)
    t = jnp.dot(x_ref[...], w_ref[...], preferred_element_type=jnp.float32)
    t = t + b1_ref[...]                       # folded bottleneck BatchNorm2d bias
    # LeakyReLU(0.1) fused with folded bnneck BatchNorm2d: select-of-scale + add
    y = jnp.where(t >= 0.0, t * s2p_ref[...], t * s2n_ref[...]) + b2_ref[...]
    o_ref[...] = y.astype(o_ref.dtype)


def _round_up(n, m):
    return ((n + m - 1) // m) * m


@functools.partial(jax.jit, static_argnames=("tm",))
def reduction_head_forward(x_nchw, conv_w, bn1_params, bn2_params, tm=512):
    """Forward pass of ReductionHead.

    x_nchw: (B, Cin, H, W) float32
    conv_w: (R, Cin, 1, 1) float32   -- Conv2d(in_feat, reduction_dim, 1, bias=False)
    bn*_params: (gamma, beta, running_mean, running_var), each (R,)
    returns: (B, R)  == bnneck(leaky_relu(bn(conv(x))))[..., 0, 0]
    """
    eps = 1e-5
    B, Cin, H, W = x_nchw.shape
    R = conv_w.shape[0]

    # --- Structural win: only spatial position (0,0) is ever used. ---
    x = x_nchw[:, :, 0, 0]                  # (B, Cin)
    w = conv_w.reshape(R, Cin).T            # (Cin, R)

    # Fold BN stats (inference mode) into per-channel scale/bias.
    g1, be1, m1, v1 = bn1_params
    g2, be2, m2, v2 = bn2_params
    s1 = g1 * jax.lax.rsqrt(v1 + eps)
    b1 = be1 - m1 * s1
    s2 = g2 * jax.lax.rsqrt(v2 + eps)
    b2 = be2 - m2 * s2

    # Fold bn1 scale into the conv weight (one fewer VPU mul + one fewer operand).
    w = w * s1[None, :]                     # (Cin, R)
    s2_pos = s2
    s2_neg = 0.1 * s2                       # LeakyReLU negative slope pre-multiplied

    # Lane-dense output: pad channel dim to a multiple of 128.
    Rp = _round_up(R, 128)
    if Rp != R:
        w = jnp.pad(w, ((0, 0), (0, Rp - R)))
        b1 = jnp.pad(b1, (0, Rp - R))
        s2_pos = jnp.pad(s2_pos, (0, Rp - R))
        s2_neg = jnp.pad(s2_neg, (0, Rp - R))
        b2 = jnp.pad(b2, (0, Rp - R))
    b1, s2_pos, s2_neg, b2 = (
        p.reshape(1, Rp).astype(jnp.float32) for p in (b1, s2_pos, s2_neg, b2)
    )
    w = w.astype(jnp.float32)

    # Pad rows (batch only — tiny) to a sublane multiple and pick the tile size.
    rows = _round_up(B, 8)
    tm_eff = min(tm, rows)
    rows = _round_up(rows, tm_eff)
    if rows != B:
        x = jnp.pad(x, ((0, rows - B), (0, 0)))

    grid = (rows // tm_eff,)
    out_padded = pl.pallas_call(
        _head_kernel,
        out_shape=jax.ShapeDtypeStruct((rows, Rp), jnp.float32),
        grid_spec=pltpu.PrefetchScalarGridSpec(
            num_scalar_prefetch=0,
            grid=grid,
            in_specs=[
                pl.BlockSpec((tm_eff, Cin), lambda i: (i, 0)),   # activations tile
                pl.BlockSpec((Cin, Rp), lambda i: (0, 0)),       # folded conv weight (resident)
                pl.BlockSpec((1, Rp), lambda i: (0, 0)),         # bn1 bias (folded)
                pl.BlockSpec((1, Rp), lambda i: (0, 0)),         # bn2 scale (pos branch)
                pl.BlockSpec((1, Rp), lambda i: (0, 0)),         # bn2 scale * 0.1 (neg branch)
                pl.BlockSpec((1, Rp), lambda i: (0, 0)),         # bn2 bias
            ],
            out_specs=pl.BlockSpec((tm_eff, Rp), lambda i: (i, 0)),
        ),
        compiler_params=pltpu.CompilerParams(
            dimension_semantics=("parallel",)),
    )(x, w, b1, s2_pos, s2_neg, b2)

    return out_padded[:B, :R]


def _reference(x_nchw, conv_w, bn1_params, bn2_params):
    """Pure-JAX reference of the PyTorch forward (eval-mode BN)."""
    eps = 1e-5
    B, Cin, H, W = x_nchw.shape
    R = conv_w.shape[0]
    w = conv_w.reshape(R, Cin)
    y = jnp.einsum("bchw,rc->brhw", x_nchw, w)
    g1, be1, m1, v1 = bn1_params
    y = (y - m1[None, :, None, None]) / jnp.sqrt(v1[None, :, None, None] + eps)
    y = y * g1[None, :, None, None] + be1[None, :, None, None]
    y = jnp.where(y >= 0.0, y, 0.1 * y)
    g2, be2, m2, v2 = bn2_params
    y = (y - m2[None, :, None, None]) / jnp.sqrt(v2[None, :, None, None] + eps)
    y = y * g2[None, :, None, None] + be2[None, :, None, None]
    return y[..., 0, 0]


if __name__ == "__main__":
    B, Cin, H, W = 2, 4, 16, 16
    R = 32  # reduction_dim

    key = jax.random.PRNGKey(0)
    k_x, k_w, k_g1, k_b1, k_m1, k_v1, k_g2, k_b2, k_m2, k_v2 = jax.random.split(key, 10)

    x = jax.random.normal(k_x, (B, Cin, H, W), dtype=jnp.float32)
    # Deterministic "kaiming-ish" conv weight init (synthetic, not a checkpoint).
    conv_w = jax.random.normal(k_w, (R, Cin, 1, 1), dtype=jnp.float32) * (2.0 / Cin) ** 0.5

    bn1 = (
        1.0 + 0.02 * jax.random.normal(k_g1, (R,), dtype=jnp.float32),  # gamma
        0.01 * jax.random.normal(k_b1, (R,), dtype=jnp.float32),        # beta
        0.1 * jax.random.normal(k_m1, (R,), dtype=jnp.float32),         # running_mean
        1.0 + 0.1 * jax.random.uniform(k_v1, (R,), dtype=jnp.float32),  # running_var
    )
    bn2 = (
        1.0 + 0.02 * jax.random.normal(k_g2, (R,), dtype=jnp.float32),
        jnp.zeros((R,), dtype=jnp.float32),  # bnneck.bias frozen (requires_grad_(False))
        0.1 * jax.random.normal(k_m2, (R,), dtype=jnp.float32),
        1.0 + 0.1 * jax.random.uniform(k_v2, (R,), dtype=jnp.float32),
    )

    out = reduction_head_forward(x, conv_w, bn1, bn2)
    out = jax.block_until_ready(out)

    ref = _reference(x, conv_w, bn1, bn2)
    assert out.shape == (B, R), out.shape
    assert jnp.allclose(out, ref, atol=1e-5, rtol=1e-5), float(jnp.max(jnp.abs(out - ref)))

    print("KERNEL_OK")
</pallas_src>

<mosaic_0001>
module attributes {stable_mosaic.version = 11 : i64} {
  func.func @_head_kernel(%arg0: i32, %arg1: memref<8x4xf32, #tpu.memory_space<vmem>>, %arg2: memref<4x128xf32, #tpu.memory_space<vmem>>, %arg3: memref<1x128xf32, #tpu.memory_space<vmem>>, %arg4: memref<1x128xf32, #tpu.memory_space<vmem>>, %arg5: memref<1x128xf32, #tpu.memory_space<vmem>>, %arg6: memref<1x128xf32, #tpu.memory_space<vmem>>, %arg7: memref<8x128xf32, #tpu.memory_space<vmem>>) attributes {dimension_semantics = [#tpu.dimension_semantics<parallel>], iteration_bounds = array<i64: 1>, scalar_prefetch = 0 : i64, scratch_operands = 0 : i64, tpu.core_type = #tpu.core_type<tc>, window_params = [{transform_indices = @transform_0, window_bounds = array<i64: 8, 4>}, {pipeline_mode = #tpu.pipeline_mode<synchronous>, transform_indices = @transform_1, window_bounds = array<i64: 4, 128>}, {pipeline_mode = #tpu.pipeline_mode<synchronous>, transform_indices = @transform_2, window_bounds = array<i64: 1, 128>}, {pipeline_mode = #tpu.pipeline_mode<synchronous>, transform_indices = @transform_3, window_bounds = array<i64: 1, 128>}, {pipeline_mode = #tpu.pipeline_mode<synchronous>, transform_indices = @transform_4, window_bounds = array<i64: 1, 128>}, {pipeline_mode = #tpu.pipeline_mode<synchronous>, transform_indices = @transform_5, window_bounds = array<i64: 1, 128>}, {transform_indices = @transform_6, window_bounds = array<i64: 8, 128>}]} {
    %c0 = arith.constant 0 : index
    %c0_0 = arith.constant 0 : index
    %0 = vector.load %arg1[%c0, %c0_0] : memref<8x4xf32, #tpu.memory_space<vmem>>, vector<8x4xf32>
    %c0_1 = arith.constant 0 : index
    %c0_2 = arith.constant 0 : index
    %1 = vector.load %arg2[%c0_1, %c0_2] : memref<4x128xf32, #tpu.memory_space<vmem>>, vector<4x128xf32>
    %cst = arith.constant dense<0.000000e+00> : vector<8x128xf32>
    %2 = tpu.matmul %0, %1, %cst {dimension_numbers = #tpu.dot_dimension_numbers<[1], [0], [0], [1], [0, 0, 1, 1], [], []>} : vector<8x4xf32>, vector<4x128xf32>, vector<8x128xf32> -> vector<8x128xf32>
    %c0_3 = arith.constant 0 : index
    %c0_4 = arith.constant 0 : index
    %3 = vector.load %arg3[%c0_3, %c0_4] : memref<1x128xf32, #tpu.memory_space<vmem>>, vector<1x128xf32>
    %4 = vector.broadcast %3 : vector<1x128xf32> to vector<8x128xf32>
    %5 = arith.addf %2, %4 : vector<8x128xf32>
    %cst_5 = arith.constant 0.000000e+00 : f32
    %6 = vector.broadcast %cst_5 : f32 to vector<8x128xf32>
    %7 = arith.cmpf oge, %5, %6 : vector<8x128xf32>
    %c0_6 = arith.constant 0 : index
    %c0_7 = arith.constant 0 : index
    %8 = vector.load %arg4[%c0_6, %c0_7] : memref<1x128xf32, #tpu.memory_space<vmem>>, vector<1x128xf32>
    %9 = vector.broadcast %8 : vector<1x128xf32> to vector<8x128xf32>
    %10 = arith.mulf %5, %9 : vector<8x128xf32>
    %c0_8 = arith.constant 0 : index
    %c0_9 = arith.constant 0 : index
    %11 = vector.load %arg5[%c0_8, %c0_9] : memref<1x128xf32, #tpu.memory_space<vmem>>, vector<1x128xf32>
    %12 = vector.broadcast %11 : vector<1x128xf32> to vector<8x128xf32>
    %13 = arith.mulf %5, %12 : vector<8x128xf32>
    %14 = arith.select %7, %10, %13 : vector<8x128xi1>, vector<8x128xf32>
    %c0_10 = arith.constant 0 : index
    %c0_11 = arith.constant 0 : index
    %15 = vector.load %arg6[%c0_10, %c0_11] : memref<1x128xf32, #tpu.memory_space<vmem>>, vector<1x128xf32>
    %16 = vector.broadcast %15 : vector<1x128xf32> to vector<8x128xf32>
    %17 = arith.addf %14, %16 : vector<8x128xf32>
    %c0_12 = arith.constant 0 : index
    %c0_13 = arith.constant 0 : index
    %18 = vector.load %arg7[%c0_12, %c0_13] : memref<8x128xf32, #tpu.memory_space<vmem>>, vector<8x128xf32>
    tpu.vector_store %arg7[%c0_12, %c0_13], %17 {strides = array<i32>} : memref<8x128xf32, #tpu.memory_space<vmem>>, vector<8x128xf32>,
    return
  }
  func.func @transform_0(%arg0: i32) -> (i32, i32) {
    %c0_i32 = arith.constant 0 : i32
    %c0_i32_0 = arith.constant 0 : i32
    return %arg0, %c0_i32 : i32, i32
  }
  func.func @transform_1(%arg0: i32) -> (i32, i32) {
    %c0_i32 = arith.constant 0 : i32
    %c0_i32_0 = arith.constant 0 : i32
    %c0_i32_1 = arith.constant 0 : i32
    return %c0_i32, %c0_i32_0 : i32, i32
  }
  func.func @transform_2(%arg0: i32) -> (i32, i32) {
    %c0_i32 = arith.constant 0 : i32
    %c0_i32_0 = arith.constant 0 : i32
    %c0_i32_1 = arith.constant 0 : i32
    return %c0_i32, %c0_i32_0 : i32, i32
  }
  func.func @transform_3(%arg0: i32) -> (i32, i32) {
    %c0_i32 = arith.constant 0 : i32
    %c0_i32_0 = arith.constant 0 : i32
    %c0_i32_1 = arith.constant 0 : i32
    return %c0_i32, %c0_i32_0 : i32, i32
  }
  func.func @transform_4(%arg0: i32) -> (i32, i32) {
    %c0_i32 = arith.constant 0 : i32
    %c0_i32_0 = arith.constant 0 : i32
    %c0_i32_1 = arith.constant 0 : i32
    return %c0_i32, %c0_i32_0 : i32, i32
  }
  func.func @transform_5(%arg0: i32) -> (i32, i32) {
    %c0_i32 = arith.constant 0 : i32
    %c0_i32_0 = arith.constant 0 : i32
    %c0_i32_1 = arith.constant 0 : i32
    return %c0_i32, %c0_i32_0 : i32, i32
  }
  func.func @transform_6(%arg0: i32) -> (i32, i32) {
    %c0_i32 = arith.constant 0 : i32
    %c0_i32_0 = arith.constant 0 : i32
    return %arg0, %c0_i32 : i32, i32
  }
}

</mosaic_0001>

<llo_original>
// kernel: reduction_head_forward.1
$region0: #{reduction_head_forward.1}
  #allocation0 [shape = 'u32[]', space=smem, size = 0x4, offset = 0x4, fixed_abs, tag = 'smem constant byte address 0x4 - core index']
  #allocation1 [shape = 'u32[144,128]{1,0:T(1,128)}', space=vmem, size = 0x12000, scoped, tag = 'internal scratch']
  %s0 = inlined_call_operand.vmem [shape: f32[8,4], index: 0, kind: input, shape index: {}]
  %s1 = inlined_call_operand.vmem [shape: f32[4,128], index: 1, kind: input, shape index: {}]
  %s2 = inlined_call_operand.vmem [shape: f32[1,128], index: 2, kind: input, shape index: {}]
  %s3 = inlined_call_operand.vmem [shape: f32[1,128], index: 3, kind: input, shape index: {}]
  %s4 = inlined_call_operand.vmem [shape: f32[1,128], index: 4, kind: input, shape index: {}]
  %s5 = inlined_call_operand.vmem [shape: f32[1,128], index: 5, kind: input, shape index: {}]
  %s6 = inlined_call_operand.vmem [shape: f32[8,128], index: 6, kind: output, shape index: {}]
  %s7 = sld [smem:[#allocation0]]
  $region34: #{reduction_head_forward.1} parent=0
    _
  %s9 = ssub.s32 1, %s7
  %s10 = scalar_select 0, %s9, %s7
  // Predicated region
  $region2: #{reduction_head_forward.1} parent=0 // pred_check
    _
  $region3: #{reduction_head_forward.1} parent=0 // pred_check_branch
    %12 = sbr.rel (0) target = $region5
  $region4: #{reduction_head_forward.1} parent=0 // pred_region
    _
  $region5: #{reduction_head_forward.1} parent=0 // pred_fallthru
    _
  // Predicated region
  $region6: #{reduction_head_forward.1} parent=0 // pred_check
    _
  $region7: #{reduction_head_forward.1} parent=0 // pred_check_branch
    %14 = sbr.rel (0) target = $region9
  $region8: #{reduction_head_forward.1} parent=0 // pred_region
    _
  $region9: #{reduction_head_forward.1} parent=0 // pred_fallthru
    _
  // Predicated region
  $region10: #{reduction_head_forward.1} parent=0 // pred_check
    _
  $region11: #{reduction_head_forward.1} parent=0 // pred_check_branch
    %16 = sbr.rel (0) target = $region13
  $region12: #{reduction_head_forward.1} parent=0 // pred_region
    _
  $region13: #{reduction_head_forward.1} parent=0 // pred_fallthru
    _
  // Predicated region
  $region14: #{reduction_head_forward.1} parent=0 // pred_check
    _
  $region15: #{reduction_head_forward.1} parent=0 // pred_check_branch
    %18 = sbr.rel (0) target = $region17
  $region16: #{reduction_head_forward.1} parent=0 // pred_region
    _
  $region17: #{reduction_head_forward.1} parent=0 // pred_fallthru
    _
  // Predicated region
  $region18: #{reduction_head_forward.1} parent=0 // pred_check
    _
  $region19: #{reduction_head_forward.1} parent=0 // pred_check_branch
    %20 = sbr.rel (0) target = $region21
  $region20: #{reduction_head_forward.1} parent=0 // pred_region
    _
  $region21: #{reduction_head_forward.1} parent=0 // pred_fallthru
    _
  // Predicated region
  $region22: #{reduction_head_forward.1} parent=0 // pred_check
    _
  $region23: #{reduction_head_forward.1} parent=0 // pred_check_branch
    %22 = sbr.rel (0) target = $region25
  $region24: #{reduction_head_forward.1} parent=0 // pred_region
    _
  $region25: #{reduction_head_forward.1} parent=0 // pred_fallthru
    _
  %v23 = vld [vmem:[%s0] sm:$0xff]
  %v24 = vld [vmem:[%s1] sm:$0xf]
  %v25 = vld [vmem:[%s2] sm:$0x1]
  %v27 = vlaneseq
  %v28 = vshrl.u32 %v27, 7
  %v29 = vsub.s32 0, %v28
  %v30 = vrot.slane %v25, %v29
  %vm32 = vcmask 31744
  %v34 = vsel %vm32, %v23, 0
  %vm36 = vcmask 1043456
  %v38 = vsel %vm36, %v24, 0
  %40 = vmatprep.subr.mxu0 0.0
  %41 = vmatpush1.msra.mxu0 0.0
  %42 = vmatprep.subr.mxu0 0.0
  %43 = vmatpush1.msra.mxu0 0.0
  %44 = vmatprep.subr.mxu0 0.0
  %45 = vmatpush1.msra.mxu0 0.0
  %46 = vmatprep.subr.mxu0 0.0
  %47 = vmatpush1.msra.mxu0 0.0
  %48 = vmatprep.subr.mxu0 0.0
  %49 = vmatpush1.msra.mxu0 0.0
  %50 = vmatprep.subr.mxu0 0.0
  %51 = vmatpush1.msra.mxu0 0.0
  %52 = vmatprep.subr.mxu0 0.0
  %53 = vmatpush1.msra.mxu0 0.0
  %54 = vmatprep.subr.mxu0 0.0
  %55 = vmatpush1.msra.mxu0 0.0
  %56 = vmatprep.subr.mxu0 0.0
  %57 = vmatpush1.msra.mxu0 0.0
  %58 = vmatprep.subr.mxu0 0.0
  %59 = vmatpush1.msra.mxu0 0.0
  %60 = vmatprep.subr.mxu0 0.0
  %61 = vmatpush1.msra.mxu0 0.0
  %62 = vmatprep.subr.mxu0 0.0
  %63 = vmatpush1.msra.mxu0 0.0
  %64 = vmatprep.subr.mxu0 0.0
  %65 = vmatpush1.msra.mxu0 0.0
  %66 = vmatprep.subr.mxu0 0.0
  %67 = vmatpush1.msra.mxu0 0.0
  %68 = vmatprep.subr.mxu0 0.0
  %69 = vmatpush1.msra.mxu0 0.0
  %70 = vmatprep.subr.mxu0 0.0
  %71 = vmatpush1.msra.mxu0 %v38
  %72 = vmatprep.subr.mxu0 0.0
  %73 = vmatpush2.msra.mxu0 0.0
  %74 = vmatprep.subr.mxu0 0.0
  %75 = vmatpush2.msra.mxu0 0.0
  %76 = vmatprep.subr.mxu0 0.0
  %77 = vmatpush2.msra.mxu0 0.0
  %78 = vmatprep.subr.mxu0 0.0
  %79 = vmatpush2.msra.mxu0 0.0
  %80 = vmatprep.subr.mxu0 0.0
  %81 = vmatpush2.msra.mxu0 0.0
  %82 = vmatprep.subr.mxu0 0.0
  %83 = vmatpush2.msra.mxu0 0.0
  %84 = vmatprep.subr.mxu0 0.0
  %85 = vmatpush2.msra.mxu0 0.0
  %86 = vmatprep.subr.mxu0 0.0
  %87 = vmatpush2.msra.mxu0 0.0
  %88 = vmatprep.subr.mxu0 0.0
  %89 = vmatpush2.msra.mxu0 0.0
  %90 = vmatprep.subr.mxu0 0.0
  %91 = vmatpush2.msra.mxu0 0.0
  %92 = vmatprep.subr.mxu0 0.0
  %93 = vmatpush2.msra.mxu0 0.0
  %94 = vmatprep.subr.mxu0 0.0
  %95 = vmatpush2.msra.mxu0 0.0
  %96 = vmatprep.subr.mxu0 0.0
  %97 = vmatpush2.msra.mxu0 0.0
  %98 = vmatprep.subr.mxu0 0.0
  %99 = vmatpush2.msra.mxu0 0.0
  %100 = vmatprep.subr.mxu0 0.0
  %101 = vmatpush2.msra.mxu0 0.0
  %102 = vmatprep.subr.mxu0 0.0
  %103 = vmatpush2.msra.mxu0 0.0
  %104 = vmatprep.mubr.f32.mxu0 0.0
  %105 = vmatmul.mubr.f32.gmra.mxu0 %v34
  %v106 = vpop.f32.mrf.mxu0
  %v107 = vadd.f32 %v30, %v106
  %v108 = vpop.f32.mrf.mxu0
  %109 = vdwg.mxu0
  %vm110 = vcmp.ge.f32.partialorder %v107, 0.0
  %v111 = vld [vmem:[%s3] sm:$0x1]
  %v113 = vlaneseq
  %v114 = vshrl.u32 %v113, 7
  %v115 = vsub.s32 0, %v114
  %v116 = vrot.slane %v111, %v115
  %v118 = vmul.f32 %v107, %v116
  %v119 = vld [vmem:[%s4] sm:$0x1]
  %v121 = vlaneseq
  %v122 = vshrl.u32 %v121, 7
  %v123 = vsub.s32 0, %v122
  %v124 = vrot.slane %v119, %v123
  %v126 = vmul.f32 %v107, %v124
  %v127 = vsel %vm110, %v118, %v126
  %v128 = vld [vmem:[%s5] sm:$0x1]
  %v130 = vlaneseq
  %v131 = vshrl.u32 %v130, 7
  %v132 = vsub.s32 0, %v131
  %v133 = vrot.slane %v128, %v132
  %v135 = vadd.f32 %v127, %v133
  %136 = vst [vmem:[%s6] sm:$0xff] %v135
  // Predicated region
  $region26: #{reduction_head_forward.1} parent=0 // pred_check
    _
  $region27: #{reduction_head_forward.1} parent=0 // pred_check_branch
    %138 = sbr.rel (0) target = $region29
  $region28: #{reduction_head_forward.1} parent=0 // pred_region
    _
  $region29: #{reduction_head_forward.1} parent=0 // pred_fallthru
    _
  // Predicated region
  $region30: #{reduction_head_forward.1} parent=0 // pred_check
    _
  $region31: #{reduction_head_forward.1} parent=0 // pred_check_branch
    %140 = sbr.rel (0) target = $region33
  $region32: #{reduction_head_forward.1} parent=0 // pred_region
    _
  $region33: #{reduction_head_forward.1} parent=0 // pred_fallthru
    _

</llo_original>
